<compile_context>
chip_gen: v5e
topology: v5e:2x2
jax: 0.10.0
libtpu: 0.0.40
codegen_flags: <defaults>
</compile_context>

<pallas_src>
import jax
import jax.numpy as jnp
from jax.experimental import pallas as pl
from jax.experimental.pallas import tpu as pltpu

SMOOTH = 1.0
P = 2

LANES = 128
MAX_BLOCK_ROWS = 4096  # 4096 * 128 * 4B = 2 MiB per f32 input block


def _make_dice_kernel(block_rows, valid_rows, steps_per_chunk, ragged):
    """Build the kernel with static tiling parameters closed over."""

    def kernel(p_ref, t_ref, out_ref, num_acc, den_acc):
        # p_ref, t_ref : VMEM tiles of shape (block_rows, LANES)
        # out_ref      : SMEM (1, 2) per-chunk partials [num_sum, den_sum]
        # num_acc/den_acc : VMEM (1, LANES) lane-wise running sums
        c = pl.program_id(0)  # chunk index ("parallel")
        k = pl.program_id(1)  # step within chunk ("arbitrary", reduction)

        @pl.when(k == 0)
        def _():
            num_acc[...] = jnp.zeros_like(num_acc)
            den_acc[...] = jnp.zeros_like(den_acc)

        p = p_ref[...].astype(jnp.float32)
        t = t_ref[...].astype(jnp.float32)

        if ragged:
            # Rows past `valid_rows` belong to the out-of-bounds tail of the
            # last block; their VMEM contents are undefined, so select (not
            # multiply, which could propagate NaN/Inf garbage) them to zero.
            row0 = (c * steps_per_chunk + k) * block_rows
            rows = row0 + jax.lax.broadcasted_iota(jnp.int32, p.shape, 0)
            valid = rows < valid_rows
            p = jnp.where(valid, p, 0.0)
            t = jnp.where(valid, t, 0.0)

        # Lane-wise partial sums: cheap VPU adds per step, no full cross-lane
        # reduction and no SMEM scalar round-trip inside the hot loop.
        num_acc[...] += jnp.sum(p * t, axis=0, keepdims=True)
        if P == 2:
            den_acc[...] += jnp.sum(p * p + t * t, axis=0, keepdims=True)
        else:
            den_acc[...] += jnp.sum(
                jnp.power(p, P) + jnp.power(t, P), axis=0, keepdims=True
            )

        @pl.when(k == pl.num_programs(1) - 1)
        def _():
            # Single cross-lane reduction per chunk, done once.
            out_ref[0, 0] = jnp.sum(num_acc[...])
            out_ref[0, 1] = jnp.sum(den_acc[...])

    return kernel


def binary_dice_loss(predict, target):
    """predict, target: [N, *] arrays (same shape); returns scalar loss."""
    assert predict.shape[0] == target.shape[0], "batch size mismatch"

    total = predict.size
    # Flatten fully; for contiguous inputs these reshapes are bitcasts (no
    # HBM copy), unlike the previous wrapper-side jnp.pad.
    p_flat = predict.reshape(-1)
    t_flat = target.reshape(-1)

    lane_pad = (-total) % LANES
    if lane_pad:
        # Rare fallback when total isn't a multiple of 128 lanes; zeros add 0
        # to both sums. (Costs one extra copy, avoided for typical shapes.)
        p_flat = jnp.pad(p_flat, (0, lane_pad))
        t_flat = jnp.pad(t_flat, (0, lane_pad))
    rows = (total + lane_pad) // LANES

    p2 = p_flat.reshape(rows, LANES)
    t2 = t_flat.reshape(rows, LANES)

    # Block over rows with full 128-lane width: each block is a contiguous
    # HBM chunk. Full-extent block when small, else 4096 rows (mult. of 8).
    block_rows = rows if rows <= MAX_BLOCK_ROWS else MAX_BLOCK_ROWS
    total_steps = pl.cdiv(rows, block_rows)
    ragged = (rows % block_rows) != 0

    # v7x: split the reduction across 2 chunks on a "parallel" outer axis so
    # both TensorCores share the DMA+VPU work. Only when it divides evenly
    # (keeps every block index in bounds); neutral on v5e/v6e.
    num_chunks = 2 if (total_steps % 2 == 0 and total_steps >= 2) else 1
    steps_per_chunk = total_steps // num_chunks

    kernel = _make_dice_kernel(block_rows, rows, steps_per_chunk, ragged)

    itemsize = jnp.dtype(p2.dtype).itemsize
    cost = pl.CostEstimate(
        flops=6 * total,
        transcendentals=0,
        bytes_accessed=(p2.size + t2.size) * itemsize + num_chunks * 2 * 4,
    )

    in_spec = pl.BlockSpec(
        (block_rows, LANES), lambda c, k: (c * steps_per_chunk + k, 0)
    )

    partials = pl.pallas_call(
        kernel,
        out_shape=jax.ShapeDtypeStruct((num_chunks, 2), jnp.float32),
        grid_spec=pltpu.PrefetchScalarGridSpec(
            num_scalar_prefetch=0,
            grid=(num_chunks, steps_per_chunk),
            in_specs=[in_spec, in_spec],
            out_specs=pl.BlockSpec(
                (1, 2), lambda c, k: (c, 0), memory_space=pltpu.SMEM
            ),
            scratch_shapes=[
                pltpu.VMEM((1, LANES), jnp.float32),  # lane-wise num partials
                pltpu.VMEM((1, LANES), jnp.float32),  # lane-wise den partials
            ],
        ),
        compiler_params=pltpu.CompilerParams(
            dimension_semantics=("parallel", "arbitrary"),
            # 2 inputs x 2 pipeline buffers x 2 MiB = 8 MiB worst case; give
            # explicit headroom so the tile size is legal on every generation.
            vmem_limit_bytes=32 * 1024 * 1024,
        ),
        cost_estimate=cost,
    )(p2, t2)

    num = 2.0 * jnp.sum(partials[:, 0]) + jnp.float32(SMOOTH)
    den = jnp.sum(partials[:, 1]) + jnp.float32(SMOOTH)
    return 1.0 - num / den


if __name__ == "__main__":
    key = jax.random.PRNGKey(0)
    k1, k2 = jax.random.split(key)
    # predict: probabilities in [0, 1]; target: binary mask
    predict = jax.nn.sigmoid(jax.random.normal(k1, (2, 4, 16, 16), jnp.float32))
    target = (jax.random.uniform(k2, (2, 4, 16, 16)) > 0.5).astype(jnp.float32)

    loss = binary_dice_loss(predict, target)
    jax.block_until_ready(loss)

    # Pure-JAX reference check
    p_flat = predict.reshape(2, -1)
    t_flat = target.reshape(2, -1)
    num = jnp.sum(p_flat * t_flat) * 2 + SMOOTH
    den = jnp.sum(p_flat ** P + t_flat ** P) + SMOOTH
    ref = 1.0 - num / den
    assert jnp.allclose(loss, ref, rtol=1e-5, atol=1e-6), (loss, ref)

    print("KERNEL_OK")
</pallas_src>

<mosaic_0001>
module attributes {stable_mosaic.version = 11 : i64} {
  func.func @kernel(%arg0: i32, %arg1: i32, %arg2: memref<16x128xf32, #tpu.memory_space<vmem>>, %arg3: memref<16x128xf32, #tpu.memory_space<vmem>>, %arg4: memref<1x2xf32, #tpu.memory_space<smem>>, %arg5: memref<1x128xf32, #tpu.memory_space<vmem>>, %arg6: memref<1x128xf32, #tpu.memory_space<vmem>>) attributes {dimension_semantics = [#tpu.dimension_semantics<parallel>, #tpu.dimension_semantics<arbitrary>], iteration_bounds = array<i64: 1, 1>, scalar_prefetch = 0 : i64, scratch_operands = 2 : i64, tpu.core_type = #tpu.core_type<tc>, window_params = [{transform_indices = @transform_0, window_bounds = array<i64: 16, 128>}, {transform_indices = @transform_1, window_bounds = array<i64: 16, 128>}, {transform_indices = @transform_2, window_bounds = array<i64: 1, 2>}]} {
    %c0_i32 = arith.constant 0 : i32
    %0 = arith.cmpi eq, %arg1, %c0_i32 : i32
    %1 = arith.extui %0 : i1 to i32
    %c0_i32_0 = arith.constant 0 : i32
    %2 = arith.cmpi ne, %1, %c0_i32_0 : i32
    scf.if %2 {
      %cst_15 = arith.constant 0.000000e+00 : f32
      %22 = vector.broadcast %cst_15 : f32 to vector<1x128xf32>
      %c0_16 = arith.constant 0 : index
      %c0_17 = arith.constant 0 : index
      %23 = vector.load %arg5[%c0_16, %c0_17] : memref<1x128xf32, #tpu.memory_space<vmem>>, vector<1x128xf32>
      tpu.vector_store %arg5[%c0_16, %c0_17], %22 {strides = array<i32>} : memref<1x128xf32, #tpu.memory_space<vmem>>, vector<1x128xf32>,
      %cst_18 = arith.constant 0.000000e+00 : f32
      %24 = vector.broadcast %cst_18 : f32 to vector<1x128xf32>
      %c0_19 = arith.constant 0 : index
      %c0_20 = arith.constant 0 : index
      %25 = vector.load %arg6[%c0_19, %c0_20] : memref<1x128xf32, #tpu.memory_space<vmem>>, vector<1x128xf32>
      tpu.vector_store %arg6[%c0_19, %c0_20], %24 {strides = array<i32>} : memref<1x128xf32, #tpu.memory_space<vmem>>, vector<1x128xf32>,
    } else {
    }
    %c0 = arith.constant 0 : index
    %c0_1 = arith.constant 0 : index
    %3 = vector.load %arg2[%c0, %c0_1] : memref<16x128xf32, #tpu.memory_space<vmem>>, vector<16x128xf32>
    %c0_2 = arith.constant 0 : index
    %c0_3 = arith.constant 0 : index
    %4 = vector.load %arg3[%c0_2, %c0_3] : memref<16x128xf32, #tpu.memory_space<vmem>>, vector<16x128xf32>
    %c0_4 = arith.constant 0 : index
    %c0_5 = arith.constant 0 : index
    %5 = vector.load %arg5[%c0_4, %c0_5] : memref<1x128xf32, #tpu.memory_space<vmem>>, vector<1x128xf32>
    %6 = arith.mulf %3, %4 : vector<16x128xf32>
    %cst = arith.constant dense<0.000000e+00> : vector<128xf32>
    %7 = vector.multi_reduction <add>, %6, %cst [0] : vector<16x128xf32> to vector<128xf32>
    %8 = vector.shape_cast %7 : vector<128xf32> to vector<1x128xf32>
    %9 = arith.addf %5, %8 : vector<1x128xf32>
    %c0_6 = arith.constant 0 : index
    %c0_7 = arith.constant 0 : index
    %10 = vector.load %arg5[%c0_6, %c0_7] : memref<1x128xf32, #tpu.memory_space<vmem>>, vector<1x128xf32>
    tpu.vector_store %arg5[%c0_6, %c0_7], %9 {strides = array<i32>} : memref<1x128xf32, #tpu.memory_space<vmem>>, vector<1x128xf32>,
    %c0_8 = arith.constant 0 : index
    %c0_9 = arith.constant 0 : index
    %11 = vector.load %arg6[%c0_8, %c0_9] : memref<1x128xf32, #tpu.memory_space<vmem>>, vector<1x128xf32>
    %12 = arith.mulf %3, %3 : vector<16x128xf32>
    %13 = arith.mulf %4, %4 : vector<16x128xf32>
    %14 = arith.addf %12, %13 : vector<16x128xf32>
    %cst_10 = arith.constant dense<0.000000e+00> : vector<128xf32>
    %15 = vector.multi_reduction <add>, %14, %cst_10 [0] : vector<16x128xf32> to vector<128xf32>
    %16 = vector.shape_cast %15 : vector<128xf32> to vector<1x128xf32>
    %17 = arith.addf %11, %16 : vector<1x128xf32>
    %c0_11 = arith.constant 0 : index
    %c0_12 = arith.constant 0 : index
    %18 = vector.load %arg6[%c0_11, %c0_12] : memref<1x128xf32, #tpu.memory_space<vmem>>, vector<1x128xf32>
    tpu.vector_store %arg6[%c0_11, %c0_12], %17 {strides = array<i32>} : memref<1x128xf32, #tpu.memory_space<vmem>>, vector<1x128xf32>,
    %c0_i32_13 = arith.constant 0 : i32
    %19 = arith.cmpi eq, %arg1, %c0_i32_13 : i32
    %20 = arith.extui %19 : i1 to i32
    %c0_i32_14 = arith.constant 0 : i32
    %21 = arith.cmpi ne, %20, %c0_i32_14 : i32
    scf.if %21 {
      %c0_15 = arith.constant 0 : index
      %c0_16 = arith.constant 0 : index
      %22 = vector.load %arg5[%c0_15, %c0_16] : memref<1x128xf32, #tpu.memory_space<vmem>>, vector<1x128xf32>
      %23 = vector.shape_cast %22 : vector<1x128xf32> to vector<1x1x128xf32>
      %cst_17 = arith.constant dense<0.000000e+00> : vector<1xf32>
      %24 = vector.multi_reduction <add>, %23, %cst_17 [1, 2] : vector<1x1x128xf32> to vector<1xf32>
      %25 = vector.shape_cast %24 : vector<1xf32> to vector<1x1x1xf32>
      %26 = vector.extract %25[0, 0, 0] : f32 from vector<1x1x1xf32>
      %c0_18 = arith.constant 0 : index
      %c0_19 = arith.constant 0 : index
      %27 = memref.load %arg4[%c0_18, %c0_19] : memref<1x2xf32, #tpu.memory_space<smem>>
      memref.store %26, %arg4[%c0_18, %c0_19] : memref<1x2xf32, #tpu.memory_space<smem>>
      %c0_20 = arith.constant 0 : index
      %c0_21 = arith.constant 0 : index
      %28 = vector.load %arg6[%c0_20, %c0_21] : memref<1x128xf32, #tpu.memory_space<vmem>>, vector<1x128xf32>
      %29 = vector.shape_cast %28 : vector<1x128xf32> to vector<1x1x128xf32>
      %cst_22 = arith.constant dense<0.000000e+00> : vector<1xf32>
      %30 = vector.multi_reduction <add>, %29, %cst_22 [1, 2] : vector<1x1x128xf32> to vector<1xf32>
      %31 = vector.shape_cast %30 : vector<1xf32> to vector<1x1x1xf32>
      %32 = vector.extract %31[0, 0, 0] : f32 from vector<1x1x1xf32>
      %c0_23 = arith.constant 0 : index
      %c1 = arith.constant 1 : index
      %33 = memref.load %arg4[%c0_23, %c1] : memref<1x2xf32, #tpu.memory_space<smem>>
      memref.store %32, %arg4[%c0_23, %c1] : memref<1x2xf32, #tpu.memory_space<smem>>
    } else {
    }
    return
  }
  func.func @transform_0(%arg0: i32, %arg1: i32) -> (i32, i32) {
    %c1_i32 = arith.constant 1 : i32
    %0 = arith.muli %arg0, %c1_i32 : i32
    %1 = arith.addi %0, %arg1 : i32
    %c0_i32 = arith.constant 0 : i32
    %c0_i32_0 = arith.constant 0 : i32
    return %1, %c0_i32 : i32, i32
  }
  func.func @transform_1(%arg0: i32, %arg1: i32) -> (i32, i32) {
    %c1_i32 = arith.constant 1 : i32
    %0 = arith.muli %arg0, %c1_i32 : i32
    %1 = arith.addi %0, %arg1 : i32
    %c0_i32 = arith.constant 0 : i32
    %c0_i32_0 = arith.constant 0 : i32
    return %1, %c0_i32 : i32, i32
  }
  func.func @transform_2(%arg0: i32, %arg1: i32) -> (i32, i32) {
    %c0_i32 = arith.constant 0 : i32
    %c0_i32_0 = arith.constant 0 : i32
    return %arg0, %c0_i32 : i32, i32
  }
}

</mosaic_0001>

<llo_original>
// kernel: tpu_custom_call.1
$region0: #{tpu_custom_call.1}
  #allocation0 [shape = 'u32[]', space=smem, size = 0x4, offset = 0x4, fixed_abs, tag = 'smem constant byte address 0x4 - core index']
  #allocation1 [shape = 'u32[72,128]{1,0:T(1,128)}', space=vmem, size = 0x9000, scoped, tag = 'internal scratch']
  #allocation2 [shape = 'f32[1,128]{1,0:T(1,128)}', space=vmem, size = 0x200, scoped, tag = 'scratch operand']
  #allocation3 [shape = 'f32[1,128]{1,0:T(1,128)}', space=vmem, size = 0x200, scoped, tag = 'scratch operand']
  %s0 = inlined_call_operand.hbm [shape: f32[16,128], index: 0, kind: input, shape index: {}]
  %s1 = inlined_call_operand.hbm [shape: f32[16,128], index: 1, kind: input, shape index: {}]
  %s2 = inlined_call_operand.hbm [shape: f32[1,2], index: 2, kind: output, shape index: {}]
  %s3 = sld [smem:[#allocation0]]
  $region34: #{tpu_custom_call.1} parent=0
    _
  %s5 = ssub.s32 1, %s3
  %s6 = scalar_select 0, %s5, %s3
  $region1: #{tpu_custom_call.1} parent=0
    #allocation4 [shape = 'u8[8192]{0}', space=vmem, size = 0x2000, scoped, tag = 'input window, operand 0, single buffered']
    #allocation5 [shape = 's32[1]{0}', space=sflag, size = 0x4, scoped, tag = 'scoped memory for tpu_custom_call.1']
    #allocation6 [shape = 's32[1]{0}', space=sflag, size = 0x4, scoped, tag = 'scoped memory for tpu_custom_call.1']
    #allocation7 [shape = 'u8[8192]{0}', space=vmem, size = 0x2000, scoped, tag = 'input window, operand 1, single buffered']
    #allocation8 [shape = 's32[1]{0}', space=sflag, size = 0x4, scoped, tag = 'scoped memory for tpu_custom_call.1']
    #allocation9 [shape = 'u8[512]{0}', space=smem, size = 0x200, scoped, tag = 'output window, operand 0, single buffered']
    %7 = vsyncpa [#allocation5], 0
    %8 = vsyncpa [#allocation8], 0
    %9 = vsyncpa [#allocation6], 0
    // Predicated region
    $region2: #{tpu_custom_call.1} parent=1 // pred_check
      _
    $region3: #{tpu_custom_call.1} parent=1 // pred_check_branch
      %11 = sbr.rel (0) target = $region5
    $region4: #{tpu_custom_call.1} parent=1 // pred_region
      %s12 = sadd.s32 0, 0
      %s13 = smul.u32 2, %s12
      %15 = vsyncadd [#allocation5], 0
      %s16 = smul.addr %s13, 8
      %s17 = scalar_lea.hbm %s0, %s16
      %s18 = sshll.u32 %s17, 4
      %s19 = int_to_ptr.hbm [resolvable:$true] %s18
      %s20 = sshll.u32 [#allocation4], 4
      %s21 = int_to_ptr.vmem [resolvable:$true] %s20
      %26 = dma.hbm_to_vmem [thread:$0]  %s19, 256, %s21, [#allocation5], 128, 128, 8
    $region5: #{tpu_custom_call.1} parent=1 // pred_fallthru
      _
    // Predicated region
    $region6: #{tpu_custom_call.1} parent=1 // pred_check
      _
    $region7: #{tpu_custom_call.1} parent=1 // pred_check_branch
      %28 = sbr.rel (0) target = $region9
    $region8: #{tpu_custom_call.1} parent=1 // pred_region
      %s29 = sadd.s32 0, 0
      %s30 = smul.u32 2, %s29
      %32 = vsyncadd [#allocation8], 0
      %s33 = smul.addr %s30, 8
      %s34 = scalar_lea.hbm %s1, %s33
      %s35 = sshll.u32 %s34, 4
      %s36 = int_to_ptr.hbm [resolvable:$true] %s35
      %s37 = sshll.u32 [#allocation7], 4
      %s38 = int_to_ptr.vmem [resolvable:$true] %s37
      %43 = dma.hbm_to_vmem [thread:$0]  %s36, 256, %s38, [#allocation8], 128, 128, 8
    $region9: #{tpu_custom_call.1} parent=1 // pred_fallthru
      _
    // Predicated region
    $region10: #{tpu_custom_call.1} parent=1 // pred_check
      _
    $region11: #{tpu_custom_call.1} parent=1 // pred_check_branch
      %45 = sbr.rel (0) target = $region13
    $region12: #{tpu_custom_call.1} parent=1 // pred_region
      %47 = dma.done [#allocation5], 256
    $region13: #{tpu_custom_call.1} parent=1 // pred_fallthru
      _
    // Predicated region
    $region14: #{tpu_custom_call.1} parent=1 // pred_check
      _
    $region15: #{tpu_custom_call.1} parent=1 // pred_check_branch
      %49 = sbr.rel (0) target = $region17
    $region16: #{tpu_custom_call.1} parent=1 // pred_region
      %51 = dma.done [#allocation8], 256
    $region17: #{tpu_custom_call.1} parent=1 // pred_fallthru
      _
    %s52 = sadd.s32 0, 0
    %s53 = smul.u32 2, %s52
    %s54 = sadd.s32 0, 0
    %s55 = smul.u32 2, %s54
    %p56 = scmp.eq.s32.totalorder 0, 0
    // Predicated region
    $region18: #{tpu_custom_call.1} parent=1 // pred_check
      %p57 = pneg %p56
    $region19: #{tpu_custom_call.1} parent=1 // pred_check_branch
      %59 = sbr.rel (%p57) target = $region21
    $region20: #{tpu_custom_call.1} parent=1 // pred_region
      %60 = vst [vmem:[#allocation2] sm:$0x1] 0.0
      %61 = vst [vmem:[#allocation3] sm:$0x1] 0.0
    $region21: #{tpu_custom_call.1} parent=1 // pred_fallthru
      _
    %v62 = vld [vmem:[#allocation4] sm:$0xff]
    %v63 = vld [vmem:[#allocation4 + $0x8] sm:$0xff]
    %v64 = vld [vmem:[#allocation7] sm:$0xff]
    %v65 = vld [vmem:[#allocation7 + $0x8] sm:$0xff]
    %v66 = vld [vmem:[#allocation2] sm:$0x1]
    %v67 = vmul.f32 %v62, %v64
    %v68 = vmul.f32 %v63, %v65
    %v69 = vadd.f32 %v67, %v68
    %v70 = vrot.slane %v69, 4
    %v71 = vadd.f32 %v69, %v70
    %v72 = vrot.slane %v71, 2
    %v73 = vadd.f32 %v71, %v72
    %v74 = vrot.slane %v73, 1
    %v75 = vadd.f32 %v73, %v74
    %v76 = vadd.f32 %v66, %v75
    %77 = vst [vmem:[#allocation2] sm:$0x1] %v76
    %v78 = vld [vmem:[#allocation3] sm:$0x1]
    %v79 = vmul.f32 %v62, %v62
    %v80 = vmul.f32 %v63, %v63
    %v81 = vmul.f32 %v64, %v64
    %v82 = vmul.f32 %v65, %v65
    %v83 = vadd.f32 %v79, %v81
    %v84 = vadd.f32 %v80, %v82
    %v85 = vadd.f32 %v83, %v84
    %v86 = vrot.slane %v85, 4
    %v87 = vadd.f32 %v85, %v86
    %v88 = vrot.slane %v87, 2
    %v89 = vadd.f32 %v87, %v88
    %v90 = vrot.slane %v89, 1
    %v91 = vadd.f32 %v89, %v90
    %v92 = vadd.f32 %v78, %v91
    %93 = vst [vmem:[#allocation3] sm:$0x1] %v92
    // Predicated region
    $region22: #{tpu_custom_call.1} parent=1 // pred_check
      %p94 = pneg %p56
    $region23: #{tpu_custom_call.1} parent=1 // pred_check_branch
      %96 = sbr.rel (%p94) target = $region25
    $region24: #{tpu_custom_call.1} parent=1 // pred_region
      %v97 = vld [vmem:[#allocation2] sm:$0x1]
      %vm98 = vcmask 1040384
      %v99 = vsel %vm98, %v97, 0.0
      %100 = vadd.xlane.f32.xlu0 %v99
      %v101 = vpop.xlane.xlu0 %100
      %v102 = vrot.slane %v101, 4
      %v103 = vadd.f32 %v101, %v102
      %v104 = vrot.slane %v103, 2
      %v105 = vadd.f32 %v103, %v104
      %v106 = vrot.slane %v105, 1
      %v107 = vadd.f32 %v105, %v106
      %s108 = vtos %v107
      %s109 = scalar_lea.smem [#allocation9], 0
      %110 = sst [smem:[%s109]] %s108
      %v111 = vld [vmem:[#allocation3] sm:$0x1]
      %v112 = vsel %vm98, %v111, 0.0
      %113 = vadd.xlane.f32.xlu0 %v112
      %v114 = vpop.xlane.xlu0 %113
      %v115 = vrot.slane %v114, 4
      %v116 = vadd.f32 %v114, %v115
      %v117 = vrot.slane %v116, 2
      %v118 = vadd.f32 %v116, %v117
      %v119 = vrot.slane %v118, 1
      %v120 = vadd.f32 %v118, %v119
      %s121 = vtos %v120
      %s122 = scalar_lea.smem [#allocation9], 1
      %123 = sst [smem:[%s122]] %s121
    $region25: #{tpu_custom_call.1} parent=1 // pred_fallthru
      _
    // Predicated region
    $region26: #{tpu_custom_call.1} parent=1 // pred_check
      _
    $region27: #{tpu_custom_call.1} parent=1 // pred_check_branch
      %125 = sbr.rel (0) target = $region29
    $region28: #{tpu_custom_call.1} parent=1 // pred_region
      %127 = vsyncadd [#allocation6], 0
      %s129 = sshll.u32 %s2, 4
      %s130 = int_to_ptr.hbm [resolvable:$true] %s129
      %132 = dma.smem_to_hbm [#allocation9], 16, %s130, [#allocation6]
    $region29: #{tpu_custom_call.1} parent=1 // pred_fallthru
      _
    // Predicated region
    $region30: #{tpu_custom_call.1} parent=1 // pred_check
      _
    $region31: #{tpu_custom_call.1} parent=1 // pred_check_branch
      %134 = sbr.rel (0) target = $region33
    $region32: #{tpu_custom_call.1} parent=1 // pred_region
      %136 = dma.done [#allocation6], 16
    $region33: #{tpu_custom_call.1} parent=1 // pred_fallthru
      _
    %137 = sfence
    %138 = vsyncpa [#allocation5], 1
    %139 = vsyncpa [#allocation8], 1
    %140 = vsyncpa [#allocation6], 1

</llo_original>
